<compile_context>
chip_gen: v7x
topology: tpu7x:2x2x1
jax: 0.10.0
libtpu: 0.0.40
codegen_flags: <defaults>
</compile_context>

<pallas_src>
import jax
import jax.numpy as jnp
from jax.experimental import pallas as pl
from jax.experimental.pallas import tpu as pltpu


def _tanh_kernel(x_ref, o_ref):
    # Elementwise tanh on the float32 slab (EUP on TPU).
    o_ref[...] = jnp.tanh(x_ref[...])


def complex_tanh(x: jax.Array, *, tile_rows: int = 1024) -> jax.Array:
    """Applies tanh(real) + 1j*tanh(imag) elementwise to a complex64 array."""
    if x.dtype != jnp.complex64:
        raise NotImplementedError(
            "complex_tanh Pallas kernel supports complex64 only "
            "(f64 is unsupported by Mosaic on TPU)."
        )

    orig_shape = x.shape
    lane, sub = 128, 8

    # Real/imag float32 planes, packed into one flat slab: [re..., im...].
    re = jnp.real(x).reshape(-1)
    im = jnp.imag(x).reshape(-1)
    n = re.size                      # number of complex elements
    flat = jnp.concatenate([re, im])  # (2*n,) float32
    total = flat.size                 # 2*n

    # Number of lane-dense rows needed (each row = 128 float32), multiple of 8.
    rows = pl.cdiv(total, lane * sub) * sub

    # Tile size along rows: large (amortize per-step overhead), multiple of 8.
    tr = min(tile_rows, rows)
    tr = max(sub, (tr // sub) * sub)
    # Keep at least 2 grid steps when the slab allows it, so v7x megacore
    # (dimension_semantics="parallel") can shard across both TensorCores.
    if rows // tr < 2 and rows >= 2 * sub:
        tr = max(sub, (rows // 2 // sub) * sub)

    # Pad rows up to a multiple of tr -> every block is a full (tr, 128) slab.
    rows_padded = pl.cdiv(rows, tr) * tr
    n_padded = rows_padded * lane
    if n_padded != total:
        flat = jnp.pad(flat, (0, n_padded - total))  # tanh(0)=0, sliced off below

    slab = flat.reshape(rows_padded, lane)

    grid = (rows_padded // tr,)
    spec = pl.BlockSpec((tr, lane), lambda i: (i, 0))

    out_slab = pl.pallas_call(
        _tanh_kernel,
        out_shape=jax.ShapeDtypeStruct((rows_padded, lane), jnp.float32),
        grid=grid,
        in_specs=[spec],
        out_specs=spec,
        compiler_params=pltpu.CompilerParams(
            dimension_semantics=("parallel",),
        ),
    )(slab)

    out_flat = out_slab.reshape(-1)[:total]
    re_out = out_flat[:n].reshape(orig_shape)
    im_out = out_flat[n:].reshape(orig_shape)
    return jax.lax.complex(re_out, im_out)


if __name__ == "__main__":
    key = jax.random.PRNGKey(0)
    k_re, k_im = jax.random.split(key)
    shape = (2, 4, 16, 16)  # NCHW, complex input
    x_re = jax.random.normal(k_re, shape, dtype=jnp.float32)
    x_im = jax.random.normal(k_im, shape, dtype=jnp.float32)
    x = jax.lax.complex(x_re, x_im)  # complex64

    out = complex_tanh(x)
    out = jax.block_until_ready(out)

    # Reference check against plain JAX (same semantics as the torch module).
    ref = jax.lax.complex(jnp.tanh(x_re), jnp.tanh(x_im))
    assert out.shape == shape and out.dtype == jnp.complex64
    assert jnp.allclose(out, ref, atol=1e-5, rtol=1e-5)

    print("KERNEL_OK")
</pallas_src>

<mosaic_0001>
module attributes {stable_mosaic.version = 11 : i64} {
  func.func @_tanh_kernel(%arg0: i32, %arg1: memref<16x128xf32, #tpu.memory_space<vmem>>, %arg2: memref<16x128xf32, #tpu.memory_space<vmem>>) attributes {dimension_semantics = [#tpu.dimension_semantics<parallel>], iteration_bounds = array<i64: 2>, scalar_prefetch = 0 : i64, scratch_operands = 0 : i64, tpu.core_type = #tpu.core_type<tc>, window_params = [{transform_indices = @transform_0, window_bounds = array<i64: 16, 128>}, {transform_indices = @transform_1, window_bounds = array<i64: 16, 128>}]} {
    %c0 = arith.constant 0 : index
    %c0_0 = arith.constant 0 : index
    %0 = vector.load %arg1[%c0, %c0_0] : memref<16x128xf32, #tpu.memory_space<vmem>>, vector<16x128xf32>
    %1 = math.tanh %0 : vector<16x128xf32>
    %c0_1 = arith.constant 0 : index
    %c0_2 = arith.constant 0 : index
    %2 = vector.load %arg2[%c0_1, %c0_2] : memref<16x128xf32, #tpu.memory_space<vmem>>, vector<16x128xf32>
    tpu.vector_store %arg2[%c0_1, %c0_2], %1 {strides = array<i32>} : memref<16x128xf32, #tpu.memory_space<vmem>>, vector<16x128xf32>,
    return
  }
  func.func @transform_0(%arg0: i32) -> (i32, i32) {
    %c0_i32 = arith.constant 0 : i32
    %c0_i32_0 = arith.constant 0 : i32
    return %arg0, %c0_i32 : i32, i32
  }
  func.func @transform_1(%arg0: i32) -> (i32, i32) {
    %c0_i32 = arith.constant 0 : i32
    %c0_i32_0 = arith.constant 0 : i32
    return %arg0, %c0_i32 : i32, i32
  }
}

</mosaic_0001>

<llo_original>
// kernel: tpu_custom_call.1
$region0: #{tpu_custom_call.1}
  #allocation0 [shape = 'u32[]', space=smem, size = 0x4, offset = 0x4, fixed_abs, tag = 'smem constant byte address 0x4 - core index']
  #allocation1 [shape = 'u32[144,128]{1,0:T(1,128)}', space=vmem, size = 0x12000, scoped, tag = 'internal scratch']
  %s0 = inlined_call_operand.hbm [shape: f32[32,128], index: 0, kind: input, shape index: {}]
  %s1 = inlined_call_operand.hbm [shape: f32[32,128], index: 1, kind: output, shape index: {}]
  %s2 = sld [smem:[#allocation0]]
  $region41: #{tpu_custom_call.1} parent=0
    _
  %s4 = ssub.s32 1, %s2
  %s5 = scalar_select 0, %s4, %s2
  $region1: #{tpu_custom_call.1} parent=0
    #allocation2 [shape = 'u8[16384]{0}', space=vmem, size = 0x4000, scoped, tag = 'input window, operand 0']
    #allocation3 [shape = 's32[2]{0}', space=sflag, size = 0x8, scoped, tag = 'scoped memory for tpu_custom_call.1']
    #allocation4 [shape = 's32[2]{0}', space=sflag, size = 0x8, scoped, tag = 'scoped memory for tpu_custom_call.1']
    #allocation5 [shape = 'u8[16384]{0}', space=vmem, size = 0x4000, scoped, tag = 'output window, operand 0']
    %6 = vsyncpa [#allocation3], 0
    %s7 = scalar_lea.sflag [#allocation3], 1
    %8 = vsyncpa %s7, 0
    %9 = vsyncpa [#allocation4], 0
    %s10 = scalar_lea.sflag [#allocation4], 1
    %11 = vsyncpa %s10, 0
    loop: start=0, step=1, limit=4
    $region2: #{tpu_custom_call.1} parent=1 // loop_pre_header
      _
    $region3: #{tpu_custom_call.1} parent=1 // loop_header
      %s13 = sphi 0, %s17
      %p14 = scmp.ge.s32.totalorder %s13, 4
      %s23 = sphi 0, %s25
      %s26 = sphi 0, %s23
      %s27 = sphi 0, %s26
      %s43 = sphi 0, %s27
      %s49 = sphi 0, %s51
      %s52 = sphi 0, %s49
      %s53 = sphi 0, %s52
      %s69 = sphi 0, %s53
    $region4: #{tpu_custom_call.1} parent=1 // loop_header_branch
      %16 = sbr.rel (%p14) target = $region8
    $region5: #{tpu_custom_call.1} parent=1 // loop_body
      %s18 = ssub.s32 %s13, 1
      %s19 = ssub.s32 %s13, 2
      %s20 = sadd.s32 %s13, 1
      %s21 = ssub.s32 %s13, %s20
      %p22 = scmp.eq.s32.totalorder %s21, 0
      %s24 = sadd.s32 %s23, 1
      %s25 = scalar_select %p22, %s23, %s24
      %p28 = pneg %p22
      %p29 = scmp.eq.s32.totalorder %s13, 1
      %p30 = por %p28, %p29
      %p31 = scmp.ne.s32.totalorder %s23, %s26
      %p32 = scmp.eq.s32.totalorder %s13, 0
      %p33 = por %p31, %p32
      %p34 = scmp.ne.s32.totalorder %s23, %s26
      %p35 = scmp.eq.s32.totalorder %s18, 1
      %p36 = por %p34, %p35
      %p37 = scmp.ne.s32.totalorder %s26, %s27
      %p38 = scmp.eq.s32.totalorder %s18, 0
      %p39 = por %p37, %p38
      %p40 = scmp.ne.s32.totalorder %s26, %s27
      %p41 = scmp.eq.s32.totalorder %s19, 1
      %p42 = por %p40, %p41
      %p44 = scmp.ne.s32.totalorder %s27, %s43
      %p45 = scmp.eq.s32.totalorder %s19, 0
      %p46 = por %p44, %p45
      %s47 = ssub.s32 %s13, %s20
      %p48 = scmp.eq.s32.totalorder %s47, 0
      %s50 = sadd.s32 %s49, 1
      %s51 = scalar_select %p48, %s49, %s50
      %p54 = pneg %p48
      %p55 = scmp.eq.s32.totalorder %s13, 1
      %p56 = por %p54, %p55
      %p57 = scmp.ne.s32.totalorder %s49, %s52
      %p58 = scmp.eq.s32.totalorder %s13, 0
      %p59 = por %p57, %p58
      %p60 = scmp.ne.s32.totalorder %s49, %s52
      %p61 = scmp.eq.s32.totalorder %s18, 1
      %p62 = por %p60, %p61
      %p63 = scmp.ne.s32.totalorder %s52, %s53
      %p64 = scmp.eq.s32.totalorder %s18, 0
      %p65 = por %p63, %p64
      %p66 = scmp.ne.s32.totalorder %s52, %s53
      %p67 = scmp.eq.s32.totalorder %s19, 1
      %p68 = por %p66, %p67
      %p70 = scmp.ne.s32.totalorder %s53, %s69
      %p71 = scmp.eq.s32.totalorder %s19, 0
      %p72 = por %p70, %p71
      %p73 = scmp.le.s32.totalorder 1, %s13
      %p74 = scmp.lt.s32.totalorder %s13, 3
      %p75 = pnand %p73, %p74
      %p76 = pneg %p75
      // Predicated region
      $region9: #{tpu_custom_call.1} parent=5 // pred_check
        _
      $region10: #{tpu_custom_call.1} parent=5 // pred_check_branch
        %78 = sbr.rel (%p75) target = $region12
      $region11: #{tpu_custom_call.1} parent=5 // pred_region
        %s79 = ssub.s32 %s13, 1
      $region12: #{tpu_custom_call.1} parent=5 // pred_fallthru
        _
      %p80 = scmp.lt.s32.totalorder %s13, 2
      // Predicated region
      $region13: #{tpu_custom_call.1} parent=5 // pred_check
        %p81 = pneg %p80
      $region14: #{tpu_custom_call.1} parent=5 // pred_check_branch
        %83 = sbr.rel (%p81) target = $region16
      $region15: #{tpu_custom_call.1} parent=5 // pred_region
        // Predicated region
        $region17: #{tpu_custom_call.1} parent=15 // pred_check
          %p84 = pneg %p33
        $region18: #{tpu_custom_call.1} parent=15 // pred_check_branch
          %86 = sbr.rel (%p84) target = $region20
        $region19: #{tpu_custom_call.1} parent=15 // pred_region
          %s87 = sand.u32 %s23, 1
          %s88 = scalar_lea.sflag [#allocation3], %s87
          %s89 = sand.u32 %s23, 1
          %s90 = smul.addr %s89, 16
          %s91 = scalar_lea.vmem [#allocation2], %s90
          %s92 = smul.u32 2, %s13
          %s94 = ssub.s32 256, 256
          %95 = vsyncadd %s88, %s94
          %s96 = smul.addr %s92, 128
          %s97 = scalar_lea.hbm %s0, %s96
          %s98 = sshll.u32 %s91, 4
          %s99 = int_to_ptr.vmem [resolvable:$true] %s98
          %104 = dma.hbm_to_vmem [thread:$0]  %s97, 256, %s99, %s88, 128, 128, 8
        $region20: #{tpu_custom_call.1} parent=15 // pred_fallthru
          _
      $region16: #{tpu_custom_call.1} parent=5 // pred_fallthru
        _
      %p105 = scmp.le.s32.totalorder 1, %s13
      %p106 = scmp.lt.s32.totalorder %s13, 3
      %p107 = pnand %p105, %p106
      %p108 = pneg %p107
      // Predicated region
      $region21: #{tpu_custom_call.1} parent=5 // pred_check
        _
      $region22: #{tpu_custom_call.1} parent=5 // pred_check_branch
        %110 = sbr.rel (%p107) target = $region24
      $region23: #{tpu_custom_call.1} parent=5 // pred_region
        %s111 = ssub.s32 %s13, 1
        %s112 = sand.u32 %s26, 1
        %s113 = scalar_lea.sflag [#allocation3], %s112
        %s114 = sand.u32 %s26, 1
        %s115 = smul.addr %s114, 16
        %s116 = scalar_lea.vmem [#allocation2], %s115
        // Predicated region
        $region25: #{tpu_custom_call.1} parent=23 // pred_check
          %p117 = pneg %p39
        $region26: #{tpu_custom_call.1} parent=23 // pred_check_branch
          %119 = sbr.rel (%p117) target = $region28
        $region27: #{tpu_custom_call.1} parent=23 // pred_region
          %120 = dma.done %s113, 256
        $region28: #{tpu_custom_call.1} parent=23 // pred_fallthru
          _
        %s121 = sand.u32 %s26, 1
        %s122 = scalar_lea.sflag [#allocation3], %s121
        %s123 = sand.u32 %s26, 1
        %s124 = smul.addr %s123, 16
        %s125 = scalar_lea.vmem [#allocation2], %s124
        %p126 = pneg %p39
        %p127 = pneg %p36
        %p128 = pneg %p65
        %p129 = pneg %p62
        %s130 = sand.u32 %s52, 1
        %s131 = scalar_lea.sflag [#allocation4], %s130
        %s132 = sand.u32 %s52, 1
        %s133 = smul.addr %s132, 16
        %s134 = scalar_lea.vmem [#allocation5], %s133
        %s135 = smul.u32 2, %s18
        %s136 = smul.u32 2, %s18
        %v137 = vld [vmem:[%s116] sm:$0xff]
        %v138 = vld [vmem:[%s116 + $0x8] sm:$0xff]
        %v139 = vtanh.pop %v137
        %v140 = vtanh.pop %v138
        %141 = vst [vmem:[%s134] sm:$0xff] %v139
        %142 = vst [vmem:[%s134 + $0x8] sm:$0xff] %v140
        %s143 = sand.u32 %s52, 1
        %s144 = scalar_lea.sflag [#allocation4], %s143
        %s145 = sand.u32 %s52, 1
        %s146 = smul.addr %s145, 16
        %s147 = scalar_lea.vmem [#allocation5], %s146
        // Predicated region
        $region29: #{tpu_custom_call.1} parent=23 // pred_check
          %p148 = pneg %p62
        $region30: #{tpu_custom_call.1} parent=23 // pred_check_branch
          %150 = sbr.rel (%p148) target = $region32
        $region31: #{tpu_custom_call.1} parent=23 // pred_region
          %s151 = smul.u32 2, %s18
          %s153 = ssub.s32 256, 256
          %154 = vsyncadd %s144, %s153
          %s155 = smul.addr %s151, 128
          %s156 = scalar_lea.hbm %s1, %s155
          %s157 = sshll.u32 %s147, 4
          %s158 = int_to_ptr.vmem [resolvable:$true] %s157
          %163 = dma.vmem_to_hbm [thread:$0]  %s158, 256, %s156, %s144, 128, 128, 8
        $region32: #{tpu_custom_call.1} parent=23 // pred_fallthru
          _
      $region24: #{tpu_custom_call.1} parent=5 // pred_fallthru
        _
      %p164 = scmp.le.s32.totalorder 2, %s13
      // Predicated region
      $region33: #{tpu_custom_call.1} parent=5 // pred_check
        %p165 = pneg %p164
      $region34: #{tpu_custom_call.1} parent=5 // pred_check_branch
        %167 = sbr.rel (%p165) target = $region36
      $region35: #{tpu_custom_call.1} parent=5 // pred_region
        %s168 = ssub.s32 %s13, 2
        // Predicated region
        $region37: #{tpu_custom_call.1} parent=35 // pred_check
          %p169 = pneg %p68
        $region38: #{tpu_custom_call.1} parent=35 // pred_check_branch
          %171 = sbr.rel (%p169) target = $region40
        $region39: #{tpu_custom_call.1} parent=35 // pred_region
          %s172 = sand.u32 %s53, 1
          %s173 = scalar_lea.sflag [#allocation4], %s172
          %s174 = sand.u32 %s53, 1
          %s175 = smul.addr %s174, 16
          %s176 = scalar_lea.vmem [#allocation5], %s175
          %177 = dma.done %s173, 256
        $region40: #{tpu_custom_call.1} parent=35 // pred_fallthru
          _
      $region36: #{tpu_custom_call.1} parent=5 // pred_fallthru
        _
    $region6: #{tpu_custom_call.1} parent=1 // loop_footer
      %s17 = sadd.s32 1, %s13
    $region7: #{tpu_custom_call.1} parent=1 // loop_footer_branch
      %12 = sbr.rel target = $region3
    $region8: #{tpu_custom_call.1} parent=1 // loop_exit
      _
    %178 = vsyncpa [#allocation3], 1
    %s179 = scalar_lea.sflag [#allocation3], 1
    %180 = vsyncpa %s179, 1
    %181 = vsyncpa [#allocation4], 1
    %s182 = scalar_lea.sflag [#allocation4], 1
    %183 = vsyncpa %s182, 1

</llo_original>
